<compile_context>
chip_gen: v6e
topology: v6e:2x2x1
jax: 0.10.0
libtpu: 0.0.40
codegen_flags: <defaults>
</compile_context>

<pallas_src>
import numpy as np
import jax
import jax.numpy as jnp
from jax import lax
from jax.experimental import pallas as pl
from jax.experimental.pallas import tpu as pltpu

NEG_SLOPE = 0.2          # nn.LeakyReLU(negative_slope=0.2)
PIXELNORM_EPS = 1e-8     # NormalizeLayer('PixelNorm')


def _round_up(x, m):
    return ((x + m - 1) // m) * m


def _cdiv(a, b):
    return (a + b - 1) // b


def _num_tensorcores():
    """Best-effort TensorCores-per-device count (grid 'parallel' axes shard across these).
    Defaults to 1 (single large tile) when unsure — the safe/fast choice on v5e/v6e."""
    try:
        d = jax.devices()[0]
        kind = str(getattr(d, "device_kind", "")).lower()
        if "v7" in kind:        # v7x: 2 TensorCores per chip
            return 2
    except Exception:
        pass
    return 1


def _auto_block_b(batch, n_cores, max_block=1024):
    """Batch tile: as large as possible (per-grid-step overhead dominates this kernel),
    split only when there are multiple TensorCores to feed."""
    padded = _round_up(max(batch, 8), 8)
    if n_cores > 1:
        per_core = _round_up(_cdiv(padded, n_cores), 8)
        return max(8, min(max_block, per_core))
    return max(8, min(max_block, padded))


def prepare_mapping_params(wemb, fc_w, fc_b, *, len_latent, lrmul,
                           gain_sq_base=2.0, compute_dtype=jnp.bfloat16):
    """ONE-TIME parameter prep (not on the per-forward-call path).

    wemb:    [len_latent, num_classes]   class-embedding weight (PyTorch [out, in])
    fc_w[i]: [dims[i+1], dims[i]]        FC weights (PyTorch [out, in])
    fc_b[i]: [dims[i+1]]                 FC biases

    Equalized-lr wscale is folded into the transposed weights, lrmul into the f32 biases.
    """
    def wscale(w):
        return float(np.sqrt(gain_sq_base / w.shape[1]) * lrmul)

    w0 = jnp.asarray(fc_w[0], jnp.float32)                       # [out0, 2L]
    params = dict(
        compute_dtype=jnp.dtype(compute_dtype),
        len_latent=int(len_latent),
        wemb_t=jnp.asarray(wemb).T.astype(compute_dtype),        # [C, L]
        w0_t=(w0 * wscale(fc_w[0])).T.astype(compute_dtype),     # [2L, out0]
        b0=(jnp.asarray(fc_b[0], jnp.float32) * lrmul).reshape(1, -1),
        w_rest=[(jnp.asarray(w, jnp.float32) * wscale(w)).T.astype(compute_dtype)
                for w in fc_w[1:]],                              # [in, out]
        b_rest=[(jnp.asarray(b, jnp.float32) * lrmul).reshape(1, -1)
                for b in fc_b[1:]],
    )
    return params


def _make_mapping_kernel(num_fcs):
    """Refs: (x, y, wemb_t, w0_t, b0, w1, b1, ..., out)."""

    def kernel(x_ref, y_ref, wemb_ref, w0_ref, b0_ref, *rest):
        out_ref = rest[-1]
        fc_refs = rest[:-1]                       # (w1, b1, w2, b2, ...)
        cdt = w0_ref.dtype                        # MXU input dtype (bf16 or f32)

        x32 = x_ref[...].astype(jnp.float32)      # [TB, L]
        # class embedding: y @ W_embed^T  (kept general -- y may be soft labels)
        y_emb = jnp.dot(y_ref[...].astype(cdt), wemb_ref[...],
                        preferred_element_type=jnp.float32)        # [TB, L]

        # PixelNorm over concat([x, y_emb]) -- per-row scalar, folded after the matmul.
        feat = x32.shape[1] + y_emb.shape[1]
        ssq = (jnp.sum(x32 * x32, axis=1, keepdims=True)
               + jnp.sum(y_emb * y_emb, axis=1, keepdims=True))
        inv = lax.rsqrt(ssq * (1.0 / feat) + PIXELNORM_EPS)        # [TB, 1]

        # FC 0: single K=2L matmul against the un-split, pre-scaled W0.
        z = jnp.concatenate([x_ref[...].astype(cdt), y_emb.astype(cdt)], axis=1)
        h = jnp.dot(z, w0_ref[...], preferred_element_type=jnp.float32)
        h = h * inv + b0_ref[...]
        h = jnp.maximum(h, NEG_SLOPE * h)                          # LeakyReLU(0.2)

        for i in range(num_fcs - 1):
            w_ref = fc_refs[2 * i]
            b_ref = fc_refs[2 * i + 1]
            h = jnp.dot(h.astype(cdt), w_ref[...], preferred_element_type=jnp.float32)
            h = h + b_ref[...]
            h = jnp.maximum(h, NEG_SLOPE * h)

        out_ref[...] = h.astype(out_ref.dtype)

    return kernel


def style_conditioned_mapping(x, y, params, *, block_b=None, out_dtype=None):
    """Pallas-backed forward pass.  x: [B, len_latent], y: [B, num_classes]."""
    cdt = params["compute_dtype"]
    B, L = x.shape
    C = y.shape[1]
    w_rest, b_rest = params["w_rest"], params["b_rest"]
    num_fcs = 1 + len(w_rest)
    out_dim = w_rest[-1].shape[1] if w_rest else params["w0_t"].shape[1]
    out_dtype = jnp.dtype(cdt if out_dtype is None else out_dtype)

    # Activation I/O in the compute dtype (bf16 halves the dominant HBM traffic).
    x = x.astype(cdt)
    y = y.astype(cdt)

    if block_b is None:
        block_b = _auto_block_b(B, _num_tensorcores())
    padded_b = _round_up(B, block_b)
    if padded_b != B:                       # ragged batch: pad with zero rows
        pad = padded_b - B
        x = jnp.pad(x, ((0, pad), (0, 0)))
        y = jnp.pad(y, ((0, pad), (0, 0)))

    weights = [params["wemb_t"], params["w0_t"], params["b0"]]
    for w, b in zip(w_rest, b_rest):
        weights += [w, b]
    inputs = [x, y] + weights

    # VMEM budget: double-buffered activation tiles + weights + headroom (tight enough
    # for v7x's smaller VMEM, generous enough for spilled f32 intermediates).
    nbytes = lambda a: int(np.prod(a.shape)) * jnp.dtype(a.dtype).itemsize
    act_bytes = block_b * (L * x.dtype.itemsize + C * y.dtype.itemsize
                           + out_dim * out_dtype.itemsize)
    w_bytes = sum(nbytes(a) for a in weights)
    vmem_limit = int(min(2 * act_bytes + 2 * w_bytes + (16 << 20), 32 << 20))

    kernel = _make_mapping_kernel(num_fcs)

    def _const_spec(shape):
        return pl.BlockSpec(shape, lambda i: (0, 0))

    in_specs = ([pl.BlockSpec((block_b, L), lambda i: (i, 0)),
                 pl.BlockSpec((block_b, C), lambda i: (i, 0))]
                + [_const_spec(w.shape) for w in weights])

    out = pl.pallas_call(
        kernel,
        out_shape=jax.ShapeDtypeStruct((padded_b, out_dim), out_dtype),
        grid=(padded_b // block_b,),
        in_specs=in_specs,
        out_specs=pl.BlockSpec((block_b, out_dim), lambda i: (i, 0)),
        compiler_params=pltpu.CompilerParams(
            dimension_semantics=("parallel",),
            vmem_limit_bytes=vmem_limit),
    )(*inputs)
    return out[:B]


def reference_forward(x, y, wemb, fc_w, fc_b, *, lrmul, gain_sq_base=2.0):
    """Pure-JAX (f32) reference mirroring the PyTorch module."""
    y_emb = y @ wemb.T
    z = jnp.concatenate([x, y_emb], axis=1)
    z = z * lax.rsqrt(jnp.mean(z * z, axis=1, keepdims=True) + PIXELNORM_EPS)
    h = z
    for w, b in zip(fc_w, fc_b):
        s = np.sqrt(gain_sq_base / w.shape[1]) * lrmul
        h = h @ (w * s).T + b * lrmul
        h = jnp.where(h >= 0.0, h, NEG_SLOPE * h)
    return h


if __name__ == "__main__":
    NUM_CLASSES = 16
    L = 128            # len_latent = len_dlatent (small demo size)
    NUM_FCS = 4
    LRMUL = 0.01
    GAIN_SQ_BASE = 2.0

    # dims as in __init__: linspace(len_latent, len_dlatent, num_fcs), 2L prepended.
    dims = np.linspace(L, L, NUM_FCS).astype(np.int64)
    dims = np.insert(dims, 0, 2 * L)                 # [2L, L, L, L, L]

    key = jax.random.PRNGKey(0)
    keys = jax.random.split(key, 4 + 2 * NUM_FCS)

    wemb = jax.random.normal(keys[0], (L, NUM_CLASSES), jnp.float32)
    fc_w, fc_b = [], []
    for i in range(NUM_FCS):
        fan_in, fan_out = int(dims[i]), int(dims[i + 1])
        fc_w.append(jax.random.normal(keys[1 + 2 * i], (fan_out, fan_in), jnp.float32))
        fc_b.append(jax.random.normal(keys[2 + 2 * i], (fan_out,), jnp.float32))

    def make_inputs(batch, k):
        kx, ky = jax.random.split(k)
        xb = jax.random.normal(kx, (batch, L), jnp.float32)
        labels = jax.random.randint(ky, (batch,), 0, NUM_CLASSES)
        yb = jax.nn.one_hot(labels, NUM_CLASSES, dtype=jnp.float32)
        return xb, yb

    # --- exact-semantics check: f32 compute path ---
    x16, y16 = make_inputs(16, keys[-2])
    params_f32 = prepare_mapping_params(
        wemb, fc_w, fc_b, len_latent=L, lrmul=LRMUL,
        gain_sq_base=GAIN_SQ_BASE, compute_dtype=jnp.float32)
    out32 = jax.block_until_ready(style_conditioned_mapping(x16, y16, params_f32))
    ref32 = reference_forward(x16, y16, wemb, fc_w, fc_b,
                              lrmul=LRMUL, gain_sq_base=GAIN_SQ_BASE)
    assert out32.shape == (16, L), out32.shape
    np.testing.assert_allclose(np.asarray(out32), np.asarray(ref32),
                               rtol=1e-4, atol=1e-4)

    # --- perf path: bf16 activation I/O + ragged batch (exercises padding) ---
    x20, y20 = make_inputs(20, keys[-1])
    params_bf16 = prepare_mapping_params(
        wemb, fc_w, fc_b, len_latent=L, lrmul=LRMUL,
        gain_sq_base=GAIN_SQ_BASE, compute_dtype=jnp.bfloat16)
    out16 = jax.block_until_ready(style_conditioned_mapping(x20, y20, params_bf16))
    ref16 = reference_forward(x20, y20, wemb, fc_w, fc_b,
                              lrmul=LRMUL, gain_sq_base=GAIN_SQ_BASE)
    assert out16.shape == (20, L), out16.shape
    np.testing.assert_allclose(np.asarray(out16.astype(jnp.float32)),
                               np.asarray(ref16), rtol=3e-2, atol=3e-3)

    print("KERNEL_OK")
</pallas_src>

<mosaic_0001>
module attributes {stable_mosaic.version = 11 : i64} {
  func.func @kernel(%arg0: i32, %arg1: memref<16x128xf32, #tpu.memory_space<vmem>>, %arg2: memref<16x16xf32, #tpu.memory_space<vmem>>, %arg3: memref<16x128xf32, #tpu.memory_space<vmem>>, %arg4: memref<256x128xf32, #tpu.memory_space<vmem>>, %arg5: memref<1x128xf32, #tpu.memory_space<vmem>>, %arg6: memref<128x128xf32, #tpu.memory_space<vmem>>, %arg7: memref<1x128xf32, #tpu.memory_space<vmem>>, %arg8: memref<128x128xf32, #tpu.memory_space<vmem>>, %arg9: memref<1x128xf32, #tpu.memory_space<vmem>>, %arg10: memref<128x128xf32, #tpu.memory_space<vmem>>, %arg11: memref<1x128xf32, #tpu.memory_space<vmem>>, %arg12: memref<16x128xf32, #tpu.memory_space<vmem>>) attributes {dimension_semantics = [#tpu.dimension_semantics<parallel>], iteration_bounds = array<i64: 1>, scalar_prefetch = 0 : i64, scratch_operands = 0 : i64, tpu.core_type = #tpu.core_type<tc>, window_params = [{transform_indices = @transform_0, window_bounds = array<i64: 16, 128>}, {transform_indices = @transform_1, window_bounds = array<i64: 16, 16>}, {pipeline_mode = #tpu.pipeline_mode<synchronous>, transform_indices = @transform_2, window_bounds = array<i64: 16, 128>}, {pipeline_mode = #tpu.pipeline_mode<synchronous>, transform_indices = @transform_3, window_bounds = array<i64: 256, 128>}, {pipeline_mode = #tpu.pipeline_mode<synchronous>, transform_indices = @transform_4, window_bounds = array<i64: 1, 128>}, {pipeline_mode = #tpu.pipeline_mode<synchronous>, transform_indices = @transform_5, window_bounds = array<i64: 128, 128>}, {pipeline_mode = #tpu.pipeline_mode<synchronous>, transform_indices = @transform_6, window_bounds = array<i64: 1, 128>}, {pipeline_mode = #tpu.pipeline_mode<synchronous>, transform_indices = @transform_7, window_bounds = array<i64: 128, 128>}, {pipeline_mode = #tpu.pipeline_mode<synchronous>, transform_indices = @transform_8, window_bounds = array<i64: 1, 128>}, {pipeline_mode = #tpu.pipeline_mode<synchronous>, transform_indices = @transform_9, window_bounds = array<i64: 128, 128>}, {pipeline_mode = #tpu.pipeline_mode<synchronous>, transform_indices = @transform_10, window_bounds = array<i64: 1, 128>}, {transform_indices = @transform_11, window_bounds = array<i64: 16, 128>}]} {
    %c0 = arith.constant 0 : index
    %c0_0 = arith.constant 0 : index
    %0 = vector.load %arg1[%c0, %c0_0] : memref<16x128xf32, #tpu.memory_space<vmem>>, vector<16x128xf32>
    %c0_1 = arith.constant 0 : index
    %c0_2 = arith.constant 0 : index
    %1 = vector.load %arg2[%c0_1, %c0_2] : memref<16x16xf32, #tpu.memory_space<vmem>>, vector<16x16xf32>
    %c0_3 = arith.constant 0 : index
    %c0_4 = arith.constant 0 : index
    %2 = vector.load %arg3[%c0_3, %c0_4] : memref<16x128xf32, #tpu.memory_space<vmem>>, vector<16x128xf32>
    %cst = arith.constant dense<0.000000e+00> : vector<16x128xf32>
    %3 = tpu.matmul %1, %2, %cst {dimension_numbers = #tpu.dot_dimension_numbers<[1], [0], [0], [1], [0, 0, 1, 1], [], []>} : vector<16x16xf32>, vector<16x128xf32>, vector<16x128xf32> -> vector<16x128xf32>
    %4 = arith.mulf %0, %0 : vector<16x128xf32>
    %cst_5 = arith.constant dense<0.000000e+00> : vector<16xf32>
    %5 = vector.multi_reduction <add>, %4, %cst_5 [1] : vector<16x128xf32> to vector<16xf32>
    %6 = vector.shape_cast %5 : vector<16xf32> to vector<16x1xf32>
    %7 = arith.mulf %3, %3 : vector<16x128xf32>
    %cst_6 = arith.constant dense<0.000000e+00> : vector<16xf32>
    %8 = vector.multi_reduction <add>, %7, %cst_6 [1] : vector<16x128xf32> to vector<16xf32>
    %9 = vector.shape_cast %8 : vector<16xf32> to vector<16x1xf32>
    %10 = arith.addf %6, %9 : vector<16x1xf32>
    %cst_7 = arith.constant 3.906250e-03 : f32
    %11 = vector.broadcast %cst_7 : f32 to vector<16x1xf32>
    %12 = arith.mulf %10, %11 : vector<16x1xf32>
    %cst_8 = arith.constant 9.99999993E-9 : f32
    %13 = vector.broadcast %cst_8 : f32 to vector<16x1xf32>
    %14 = arith.addf %12, %13 : vector<16x1xf32>
    %15 = math.rsqrt %14 : vector<16x1xf32>
    %c0_9 = arith.constant 0 : index
    %c0_10 = arith.constant 0 : index
    %16 = vector.load %arg1[%c0_9, %c0_10] : memref<16x128xf32, #tpu.memory_space<vmem>>, vector<16x128xf32>
    %17 = tpu.concatenate %16, %3 in 1 : vector<16x128xf32>, vector<16x128xf32> -> vector<16x256xf32>
    %c0_11 = arith.constant 0 : index
    %c0_12 = arith.constant 0 : index
    %18 = vector.load %arg4[%c0_11, %c0_12] : memref<256x128xf32, #tpu.memory_space<vmem>>, vector<256x128xf32>
    %cst_13 = arith.constant dense<0.000000e+00> : vector<16x128xf32>
    %19 = tpu.matmul %17, %18, %cst_13 {dimension_numbers = #tpu.dot_dimension_numbers<[1], [0], [0], [1], [0, 0, 1, 1], [], []>} : vector<16x256xf32>, vector<256x128xf32>, vector<16x128xf32> -> vector<16x128xf32>
    %20 = vector.broadcast %15 : vector<16x1xf32> to vector<16x128xf32>
    %21 = arith.mulf %19, %20 : vector<16x128xf32>
    %c0_14 = arith.constant 0 : index
    %c0_15 = arith.constant 0 : index
    %22 = vector.load %arg5[%c0_14, %c0_15] : memref<1x128xf32, #tpu.memory_space<vmem>>, vector<1x128xf32>
    %23 = vector.broadcast %22 : vector<1x128xf32> to vector<16x128xf32>
    %24 = arith.addf %21, %23 : vector<16x128xf32>
    %cst_16 = arith.constant 2.000000e-01 : f32
    %25 = vector.broadcast %cst_16 : f32 to vector<16x128xf32>
    %26 = arith.mulf %25, %24 : vector<16x128xf32>
    %27 = arith.maximumf %24, %26 : vector<16x128xf32>
    %c0_17 = arith.constant 0 : index
    %c0_18 = arith.constant 0 : index
    %28 = vector.load %arg6[%c0_17, %c0_18] : memref<128x128xf32, #tpu.memory_space<vmem>>, vector<128x128xf32>
    %cst_19 = arith.constant dense<0.000000e+00> : vector<16x128xf32>
    %29 = tpu.matmul %27, %28, %cst_19 {dimension_numbers = #tpu.dot_dimension_numbers<[1], [0], [0], [1], [0, 0, 1, 1], [], []>} : vector<16x128xf32>, vector<128x128xf32>, vector<16x128xf32> -> vector<16x128xf32>
    %c0_20 = arith.constant 0 : index
    %c0_21 = arith.constant 0 : index
    %30 = vector.load %arg7[%c0_20, %c0_21] : memref<1x128xf32, #tpu.memory_space<vmem>>, vector<1x128xf32>
    %31 = vector.broadcast %30 : vector<1x128xf32> to vector<16x128xf32>
    %32 = arith.addf %29, %31 : vector<16x128xf32>
    %cst_22 = arith.constant 2.000000e-01 : f32
    %33 = vector.broadcast %cst_22 : f32 to vector<16x128xf32>
    %34 = arith.mulf %33, %32 : vector<16x128xf32>
    %35 = arith.maximumf %32, %34 : vector<16x128xf32>
    %c0_23 = arith.constant 0 : index
    %c0_24 = arith.constant 0 : index
    %36 = vector.load %arg8[%c0_23, %c0_24] : memref<128x128xf32, #tpu.memory_space<vmem>>, vector<128x128xf32>
    %cst_25 = arith.constant dense<0.000000e+00> : vector<16x128xf32>
    %37 = tpu.matmul %35, %36, %cst_25 {dimension_numbers = #tpu.dot_dimension_numbers<[1], [0], [0], [1], [0, 0, 1, 1], [], []>} : vector<16x128xf32>, vector<128x128xf32>, vector<16x128xf32> -> vector<16x128xf32>
    %c0_26 = arith.constant 0 : index
    %c0_27 = arith.constant 0 : index
    %38 = vector.load %arg9[%c0_26, %c0_27] : memref<1x128xf32, #tpu.memory_space<vmem>>, vector<1x128xf32>
    %39 = vector.broadcast %38 : vector<1x128xf32> to vector<16x128xf32>
    %40 = arith.addf %37, %39 : vector<16x128xf32>
    %cst_28 = arith.constant 2.000000e-01 : f32
    %41 = vector.broadcast %cst_28 : f32 to vector<16x128xf32>
    %42 = arith.mulf %41, %40 : vector<16x128xf32>
    %43 = arith.maximumf %40, %42 : vector<16x128xf32>
    %c0_29 = arith.constant 0 : index
    %c0_30 = arith.constant 0 : index
    %44 = vector.load %arg10[%c0_29, %c0_30] : memref<128x128xf32, #tpu.memory_space<vmem>>, vector<128x128xf32>
    %cst_31 = arith.constant dense<0.000000e+00> : vector<16x128xf32>
    %45 = tpu.matmul %43, %44, %cst_31 {dimension_numbers = #tpu.dot_dimension_numbers<[1], [0], [0], [1], [0, 0, 1, 1], [], []>} : vector<16x128xf32>, vector<128x128xf32>, vector<16x128xf32> -> vector<16x128xf32>
    %c0_32 = arith.constant 0 : index
    %c0_33 = arith.constant 0 : index
    %46 = vector.load %arg11[%c0_32, %c0_33] : memref<1x128xf32, #tpu.memory_space<vmem>>, vector<1x128xf32>
    %47 = vector.broadcast %46 : vector<1x128xf32> to vector<16x128xf32>
    %48 = arith.addf %45, %47 : vector<16x128xf32>
    %cst_34 = arith.constant 2.000000e-01 : f32
    %49 = vector.broadcast %cst_34 : f32 to vector<16x128xf32>
    %50 = arith.mulf %49, %48 : vector<16x128xf32>
    %51 = arith.maximumf %48, %50 : vector<16x128xf32>
    %c0_35 = arith.constant 0 : index
    %c0_36 = arith.constant 0 : index
    %52 = vector.load %arg12[%c0_35, %c0_36] : memref<16x128xf32, #tpu.memory_space<vmem>>, vector<16x128xf32>
    tpu.vector_store %arg12[%c0_35, %c0_36], %51 {strides = array<i32>} : memref<16x128xf32, #tpu.memory_space<vmem>>, vector<16x128xf32>,
    return
  }
  func.func @transform_0(%arg0: i32) -> (i32, i32) {
    %c0_i32 = arith.constant 0 : i32
    %c0_i32_0 = arith.constant 0 : i32
    return %arg0, %c0_i32 : i32, i32
  }
  func.func @transform_1(%arg0: i32) -> (i32, i32) {
    %c0_i32 = arith.constant 0 : i32
    %c0_i32_0 = arith.constant 0 : i32
    return %arg0, %c0_i32 : i32, i32
  }
  func.func @transform_2(%arg0: i32) -> (i32, i32) {
    %c0_i32 = arith.constant 0 : i32
    %c0_i32_0 = arith.constant 0 : i32
    %c0_i32_1 = arith.constant 0 : i32
    return %c0_i32, %c0_i32_0 : i32, i32
  }
  func.func @transform_3(%arg0: i32) -> (i32, i32) {
    %c0_i32 = arith.constant 0 : i32
    %c0_i32_0 = arith.constant 0 : i32
    %c0_i32_1 = arith.constant 0 : i32
    return %c0_i32, %c0_i32_0 : i32, i32
  }
  func.func @transform_4(%arg0: i32) -> (i32, i32) {
    %c0_i32 = arith.constant 0 : i32
    %c0_i32_0 = arith.constant 0 : i32
    %c0_i32_1 = arith.constant 0 : i32
    return %c0_i32, %c0_i32_0 : i32, i32
  }
  func.func @transform_5(%arg0: i32) -> (i32, i32) {
    %c0_i32 = arith.constant 0 : i32
    %c0_i32_0 = arith.constant 0 : i32
    %c0_i32_1 = arith.constant 0 : i32
    return %c0_i32, %c0_i32_0 : i32, i32
  }
  func.func @transform_6(%arg0: i32) -> (i32, i32) {
    %c0_i32 = arith.constant 0 : i32
    %c0_i32_0 = arith.constant 0 : i32
    %c0_i32_1 = arith.constant 0 : i32
    return %c0_i32, %c0_i32_0 : i32, i32
  }
  func.func @transform_7(%arg0: i32) -> (i32, i32) {
    %c0_i32 = arith.constant 0 : i32
    %c0_i32_0 = arith.constant 0 : i32
    %c0_i32_1 = arith.constant 0 : i32
    return %c0_i32, %c0_i32_0 : i32, i32
  }
  func.func @transform_8(%arg0: i32) -> (i32, i32) {
    %c0_i32 = arith.constant 0 : i32
    %c0_i32_0 = arith.constant 0 : i32
    %c0_i32_1 = arith.constant 0 : i32
    return %c0_i32, %c0_i32_0 : i32, i32
  }
  func.func @transform_9(%arg0: i32) -> (i32, i32) {
    %c0_i32 = arith.constant 0 : i32
    %c0_i32_0 = arith.constant 0 : i32
    %c0_i32_1 = arith.constant 0 : i32
    return %c0_i32, %c0_i32_0 : i32, i32
  }
  func.func @transform_10(%arg0: i32) -> (i32, i32) {
    %c0_i32 = arith.constant 0 : i32
    %c0_i32_0 = arith.constant 0 : i32
    %c0_i32_1 = arith.constant 0 : i32
    return %c0_i32, %c0_i32_0 : i32, i32
  }
  func.func @transform_11(%arg0: i32) -> (i32, i32) {
    %c0_i32 = arith.constant 0 : i32
    %c0_i32_0 = arith.constant 0 : i32
    return %arg0, %c0_i32 : i32, i32
  }
}

</mosaic_0001>

<llo_original>
// kernel: tpu_custom_call.1
$region0: #{tpu_custom_call.1}
  #allocation0 [shape = 'u32[]', space=smem, size = 0x4, offset = 0x4, fixed_abs, tag = 'smem constant byte address 0x4 - core index']
  #allocation1 [shape = 'u32[144,128]{1,0:T(1,128)}', space=vmem, size = 0x12000, scoped, tag = 'internal scratch']
  %s0 = inlined_call_operand.hbm [shape: f32[16,128], index: 0, kind: input, shape index: {}]
  %s1 = inlined_call_operand.hbm [shape: f32[16,16], index: 1, kind: input, shape index: {}]
  %s2 = inlined_call_operand.hbm [shape: f32[16,128], index: 2, kind: input, shape index: {}]
  %s3 = inlined_call_operand.hbm [shape: f32[256,128], index: 3, kind: input, shape index: {}]
  %s4 = inlined_call_operand.vmem [shape: f32[1,128], index: 4, kind: input, shape index: {}]
  %s5 = inlined_call_operand.hbm [shape: f32[128,128], index: 5, kind: input, shape index: {}]
  %s6 = inlined_call_operand.vmem [shape: f32[1,128], index: 6, kind: input, shape index: {}]
  %s7 = inlined_call_operand.hbm [shape: f32[128,128], index: 7, kind: input, shape index: {}]
  %s8 = inlined_call_operand.vmem [shape: f32[1,128], index: 8, kind: input, shape index: {}]
  %s9 = inlined_call_operand.hbm [shape: f32[128,128], index: 9, kind: input, shape index: {}]
  %s10 = inlined_call_operand.vmem [shape: f32[1,128], index: 10, kind: input, shape index: {}]
  %s11 = inlined_call_operand.hbm [shape: f32[16,128], index: 11, kind: output, shape index: {}]
  %s12 = sld [smem:[#allocation0]]
  $region82: #{tpu_custom_call.1} parent=0
    _
  %s14 = ssub.s32 1, %s12
  %s15 = scalar_select 0, %s14, %s12
  $region1: #{tpu_custom_call.1} parent=0
    #allocation2 [shape = 'u8[8192]{0}', space=vmem, size = 0x2000, scoped, tag = 'input window, operand 0, single buffered']
    #allocation3 [shape = 's32[1]{0}', space=sflag, size = 0x4, scoped, tag = 'scoped memory for tpu_custom_call.1']
    #allocation4 [shape = 's32[1]{0}', space=sflag, size = 0x4, scoped, tag = 'scoped memory for tpu_custom_call.1']
    #allocation5 [shape = 'u8[8192]{0}', space=vmem, size = 0x2000, scoped, tag = 'input window, operand 1, single buffered']
    #allocation6 [shape = 's32[1]{0}', space=sflag, size = 0x4, scoped, tag = 'scoped memory for tpu_custom_call.1']
    #allocation7 [shape = 'u8[8192]{0}', space=vmem, size = 0x2000, scoped, tag = 'input window, operand 2, single buffered']
    #allocation8 [shape = 'u8[131072]{0}', space=vmem, size = 0x20000, scoped, tag = 'input window, operand 3, single buffered']
    #allocation9 [shape = 's32[1]{0}', space=sflag, size = 0x4, scoped, tag = 'scoped memory for tpu_custom_call.1']
    #allocation10 [shape = 'u8[65536]{0}', space=vmem, size = 0x10000, scoped, tag = 'input window, operand 5, single buffered']
    #allocation11 [shape = 'u8[65536]{0}', space=vmem, size = 0x10000, scoped, tag = 'input window, operand 7, single buffered']
    #allocation12 [shape = 's32[1]{0}', space=sflag, size = 0x4, scoped, tag = 'scoped memory for tpu_custom_call.1']
    #allocation13 [shape = 'u8[65536]{0}', space=vmem, size = 0x10000, scoped, tag = 'input window, operand 9, single buffered']
    #allocation14 [shape = 'u8[8192]{0}', space=vmem, size = 0x2000, scoped, tag = 'output window, operand 0, single buffered']
    %16 = vsyncpa [#allocation3], 0
    %17 = vsyncpa [#allocation6], 0
    %18 = vsyncpa [#allocation9], 0
    %19 = vsyncpa [#allocation12], 0
    %20 = vsyncpa [#allocation4], 0
    // Predicated region
    $region2: #{tpu_custom_call.1} parent=1 // pred_check
      _
    $region3: #{tpu_custom_call.1} parent=1 // pred_check_branch
      %22 = sbr.rel (0) target = $region5
    $region4: #{tpu_custom_call.1} parent=1 // pred_region
      %s24 = ssub.s32 256, 256
      %25 = vsyncadd [#allocation3], %s24
      %s26 = sshll.u32 [#allocation2], 4
      %s27 = int_to_ptr.vmem [resolvable:$true] %s26
      %32 = dma.hbm_to_vmem [thread:$0]  %s0, 256, %s27, [#allocation3], 128, 128, 8
    $region5: #{tpu_custom_call.1} parent=1 // pred_fallthru
      _
    // Predicated region
    $region6: #{tpu_custom_call.1} parent=1 // pred_check
      _
    $region7: #{tpu_custom_call.1} parent=1 // pred_check_branch
      %34 = sbr.rel (0) target = $region9
    $region8: #{tpu_custom_call.1} parent=1 // pred_region
      %s36 = ssub.s32 256, 256
      %37 = vsyncadd [#allocation6], %s36
      %s38 = sshll.u32 [#allocation5], 4
      %s39 = int_to_ptr.vmem [resolvable:$true] %s38
      %44 = dma.hbm_to_vmem [thread:$0]  %s1, 256, %s39, [#allocation6], 128, 128, 8
    $region9: #{tpu_custom_call.1} parent=1 // pred_fallthru
      _
    // Predicated region
    $region10: #{tpu_custom_call.1} parent=1 // pred_check
      _
    $region11: #{tpu_custom_call.1} parent=1 // pred_check_branch
      %46 = sbr.rel (0) target = $region13
    $region12: #{tpu_custom_call.1} parent=1 // pred_region
      %s48 = ssub.s32 256, 256
      %49 = vsyncadd [#allocation6], %s48
      %s50 = sshll.u32 [#allocation7], 4
      %s51 = int_to_ptr.vmem [resolvable:$true] %s50
      %56 = dma.hbm_to_vmem [thread:$0]  %s2, 256, %s51, [#allocation6], 128, 128, 8
    $region13: #{tpu_custom_call.1} parent=1 // pred_fallthru
      _
    // Predicated region
    $region14: #{tpu_custom_call.1} parent=1 // pred_check
      _
    $region15: #{tpu_custom_call.1} parent=1 // pred_check_branch
      %58 = sbr.rel (0) target = $region17
    $region16: #{tpu_custom_call.1} parent=1 // pred_region
      %s60 = ssub.s32 4096, 4096
      %61 = vsyncadd [#allocation9], %s60
      %s62 = sshll.u32 [#allocation8], 4
      %s63 = int_to_ptr.vmem [resolvable:$true] %s62
      %68 = dma.hbm_to_vmem [thread:$0]  %s3, 4096, %s63, [#allocation9], 128, 128, 8
    $region17: #{tpu_custom_call.1} parent=1 // pred_fallthru
      _
    // Predicated region
    $region18: #{tpu_custom_call.1} parent=1 // pred_check
      _
    $region19: #{tpu_custom_call.1} parent=1 // pred_check_branch
      %70 = sbr.rel (0) target = $region21
    $region20: #{tpu_custom_call.1} parent=1 // pred_region
      _
    $region21: #{tpu_custom_call.1} parent=1 // pred_fallthru
      _
    // Predicated region
    $region22: #{tpu_custom_call.1} parent=1 // pred_check
      _
    $region23: #{tpu_custom_call.1} parent=1 // pred_check_branch
      %72 = sbr.rel (0) target = $region25
    $region24: #{tpu_custom_call.1} parent=1 // pred_region
      %s74 = ssub.s32 2048, 2048
      %75 = vsyncadd [#allocation9], %s74
      %s76 = sshll.u32 [#allocation10], 4
      %s77 = int_to_ptr.vmem [resolvable:$true] %s76
      %82 = dma.hbm_to_vmem [thread:$0]  %s5, 2048, %s77, [#allocation9], 128, 128, 8
    $region25: #{tpu_custom_call.1} parent=1 // pred_fallthru
      _
    // Predicated region
    $region26: #{tpu_custom_call.1} parent=1 // pred_check
      _
    $region27: #{tpu_custom_call.1} parent=1 // pred_check_branch
      %84 = sbr.rel (0) target = $region29
    $region28: #{tpu_custom_call.1} parent=1 // pred_region
      _
    $region29: #{tpu_custom_call.1} parent=1 // pred_fallthru
      _
    // Predicated region
    $region30: #{tpu_custom_call.1} parent=1 // pred_check
      _
    $region31: #{tpu_custom_call.1} parent=1 // pred_check_branch
      %86 = sbr.rel (0) target = $region33
    $region32: #{tpu_custom_call.1} parent=1 // pred_region
      %s88 = ssub.s32 2048, 2048
      %89 = vsyncadd [#allocation12], %s88
      %s90 = sshll.u32 [#allocation11], 4
      %s91 = int_to_ptr.vmem [resolvable:$true] %s90
      %96 = dma.hbm_to_vmem [thread:$0]  %s7, 2048, %s91, [#allocation12], 128, 128, 8
    $region33: #{tpu_custom_call.1} parent=1 // pred_fallthru
      _
    // Predicated region
    $region34: #{tpu_custom_call.1} parent=1 // pred_check
      _
    $region35: #{tpu_custom_call.1} parent=1 // pred_check_branch
      %98 = sbr.rel (0) target = $region37
    $region36: #{tpu_custom_call.1} parent=1 // pred_region
      _
    $region37: #{tpu_custom_call.1} parent=1 // pred_fallthru
      _
    // Predicated region
    $region38: #{tpu_custom_call.1} parent=1 // pred_check
      _
    $region39: #{tpu_custom_call.1} parent=1 // pred_check_branch
      %100 = sbr.rel (0) target = $region41
    $region40: #{tpu_custom_call.1} parent=1 // pred_region
      %s102 = ssub.s32 2048, 2048
      %103 = vsyncadd [#allocation12], %s102
      %s104 = sshll.u32 [#allocation13], 4
      %s105 = int_to_ptr.vmem [resolvable:$true] %s104
      %110 = dma.hbm_to_vmem [thread:$0]  %s9, 2048, %s105, [#allocation12], 128, 128, 8
    $region41: #{tpu_custom_call.1} parent=1 // pred_fallthru
      _
    // Predicated region
    $region42: #{tpu_custom_call.1} parent=1 // pred_check
      _
    $region43: #{tpu_custom_call.1} parent=1 // pred_check_branch
      %112 = sbr.rel (0) target = $region45
    $region44: #{tpu_custom_call.1} parent=1 // pred_region
      _
    $region45: #{tpu_custom_call.1} parent=1 // pred_fallthru
      _
    // Predicated region
    $region46: #{tpu_custom_call.1} parent=1 // pred_check
      _
    $region47: #{tpu_custom_call.1} parent=1 // pred_check_branch
      %114 = sbr.rel (0) target = $region49
    $region48: #{tpu_custom_call.1} parent=1 // pred_region
      %115 = dma.done [#allocation3], 256
    $region49: #{tpu_custom_call.1} parent=1 // pred_fallthru
      _
    // Predicated region
    $region50: #{tpu_custom_call.1} parent=1 // pred_check
      _
    $region51: #{tpu_custom_call.1} parent=1 // pred_check_branch
      %117 = sbr.rel (0) target = $region53
    $region52: #{tpu_custom_call.1} parent=1 // pred_region
      %118 = dma.done [#allocation6], 256
    $region53: #{tpu_custom_call.1} parent=1 // pred_fallthru
      _
    // Predicated region
    $region54: #{tpu_custom_call.1} parent=1 // pred_check
      _
    $region55: #{tpu_custom_call.1} parent=1 // pred_check_branch
      %120 = sbr.rel (0) target = $region57
    $region56: #{tpu_custom_call.1} parent=1 // pred_region
      %121 = dma.done [#allocation6], 256
    $region57: #{tpu_custom_call.1} parent=1 // pred_fallthru
      _
    // Predicated region
    $region58: #{tpu_custom_call.1} parent=1 // pred_check
      _
    $region59: #{tpu_custom_call.1} parent=1 // pred_check_branch
      %123 = sbr.rel (0) target = $region61
    $region60: #{tpu_custom_call.1} parent=1 // pred_region
      %124 = dma.done [#allocation9], 4096
    $region61: #{tpu_custom_call.1} parent=1 // pred_fallthru
      _
    // Predicated region
    $region62: #{tpu_custom_call.1} parent=1 // pred_check
      _
    $region63: #{tpu_custom_call.1} parent=1 // pred_check_branch
      %126 = sbr.rel (0) target = $region65
    $region64: #{tpu_custom_call.1} parent=1 // pred_region
      %127 = dma.done [#allocation9], 2048
    $region65: #{tpu_custom_call.1} parent=1 // pred_fallthru
      _
    // Predicated region
    $region66: #{tpu_custom_call.1} parent=1 // pred_check
      _
    $region67: #{tpu_custom_call.1} parent=1 // pred_check_branch
      %129 = sbr.rel (0) target = $region69
    $region68: #{tpu_custom_call.1} parent=1 // pred_region
      %130 = dma.done [#allocation12], 2048
    $region69: #{tpu_custom_call.1} parent=1 // pred_fallthru
      _
    // Predicated region
    $region70: #{tpu_custom_call.1} parent=1 // pred_check
      _
    $region71: #{tpu_custom_call.1} parent=1 // pred_check_branch
      %132 = sbr.rel (0) target = $region73
    $region72: #{tpu_custom_call.1} parent=1 // pred_region
      %133 = dma.done [#allocation12], 2048
    $region73: #{tpu_custom_call.1} parent=1 // pred_fallthru
      _
    %v134 = vld [vmem:[#allocation2] sm:$0xff]
    %v135 = vld [vmem:[#allocation2 + $0x8] sm:$0xff]
    %v136 = vld [vmem:[#allocation5] sm:$0xff]
    %v137 = vld [vmem:[#allocation5 + $0x8] sm:$0xff]
    %v138 = vld [vmem:[#allocation7] sm:$0xff]
    %v139 = vld [vmem:[#allocation7 + $0x8] sm:$0xff]
    %vm140 = vcmask 130048
    %v142 = vsel %vm140, %v136, 0
    %v145 = vsel %vm140, %v137, 0
    %147 = vmatprep.subr.mxu0 0.0
    %148 = vmatpush1.msra.mxu0 0.0
    %149 = vmatprep.subr.mxu0 0.0
    %150 = vmatpush1.msra.mxu0 0.0
    %151 = vmatprep.subr.mxu0 0.0
    %152 = vmatpush1.msra.mxu0 0.0
    %153 = vmatprep.subr.mxu0 0.0
    %154 = vmatpush1.msra.mxu0 0.0
    %155 = vmatprep.subr.mxu0 0.0
    %156 = vmatpush1.msra.mxu0 0.0
    %157 = vmatprep.subr.mxu0 0.0
    %158 = vmatpush1.msra.mxu0 0.0
    %159 = vmatprep.subr.mxu0 0.0
    %160 = vmatpush1.msra.mxu0 0.0
    %161 = vmatprep.subr.mxu0 0.0
    %162 = vmatpush1.msra.mxu0 0.0
    %163 = vmatprep.subr.mxu0 0.0
    %164 = vmatpush1.msra.mxu0 0.0
    %165 = vmatprep.subr.mxu0 0.0
    %166 = vmatpush1.msra.mxu0 0.0
    %167 = vmatprep.subr.mxu0 0.0
    %168 = vmatpush1.msra.mxu0 0.0
    %169 = vmatprep.subr.mxu0 0.0
    %170 = vmatpush1.msra.mxu0 0.0
    %171 = vmatprep.subr.mxu0 0.0
    %172 = vmatpush1.msra.mxu0 0.0
    %173 = vmatprep.subr.mxu0 0.0
    %174 = vmatpush1.msra.mxu0 0.0
    %175 = vmatprep.subr.mxu0 0.0
    %176 = vmatpush1.msra.mxu0 %v139
    %177 = vmatprep.subr.mxu0 0.0
    %178 = vmatpush1.msra.mxu0 %v138
    %179 = vmatprep.subr.mxu0 0.0
    %180 = vmatpush2.msra.mxu0 0.0
    %181 = vmatprep.subr.mxu0 0.0
    %182 = vmatpush2.msra.mxu0 0.0
    %183 = vmatprep.subr.mxu0 0.0
    %184 = vmatpush2.msra.mxu0 0.0
    %185 = vmatprep.subr.mxu0 0.0
    %186 = vmatpush2.msra.mxu0 0.0
    %187 = vmatprep.subr.mxu0 0.0
    %188 = vmatpush2.msra.mxu0 0.0
    %189 = vmatprep.subr.mxu0 0.0
    %190 = vmatpush2.msra.mxu0 0.0
    %191 = vmatprep.subr.mxu0 0.0
    %192 = vmatpush2.msra.mxu0 0.0
    %193 = vmatprep.subr.mxu0 0.0
    %194 = vmatpush2.msra.mxu0 0.0
    %195 = vmatprep.subr.mxu0 0.0
    %196 = vmatpush2.msra.mxu0 0.0
    %197 = vmatprep.subr.mxu0 0.0
    %198 = vmatpush2.msra.mxu0 0.0
    %199 = vmatprep.subr.mxu0 0.0
    %200 = vmatpush2.msra.mxu0 0.0
    %201 = vmatprep.subr.mxu0 0.0
    %202 = vmatpush2.msra.mxu0 0.0
    %203 = vmatprep.subr.mxu0 0.0
    %204 = vmatpush2.msra.mxu0 0.0
    %205 = vmatprep.subr.mxu0 0.0
    %206 = vmatpush2.msra.mxu0 0.0
    %207 = vmatprep.subr.mxu0 0.0
    %208 = vmatpush2.msra.mxu0 0.0
    %209 = vmatprep.subr.mxu0 0.0
    %210 = vmatpush2.msra.mxu0 0.0
    %211 = vmatprep.mubr.f32.mxu0 0.0
    %212 = vmatmul.mubr.f32.gmra.mxu0 %v142
    %v213 = vpop.f32.mrf.mxu0
    %v214 = vadd.f32 0.0, %v213
    %v215 = vpop.f32.mrf.mxu0
    %216 = vmatprep.mubr.f32.mxu0 0.0
    %217 = vmatmul.mubr.f32.gmra.mxu0 %v145
    %v218 = vpop.f32.mrf.mxu0
    %v219 = vadd.f32 0.0, %v218
    %v220 = vpop.f32.mrf.mxu0
    %221 = vdwg.mxu0
    %v222 = vmul.f32 %v134, %v134
    %v223 = vmul.f32 %v135, %v135
    %224 = vadd.xlane.f32.xlu0 %v222
    %v225 = vpop.xlane.xlu0 %224
    %226 = vadd.xlane.f32.xlu0 %v223
    %v227 = vpop.xlane.xlu0 %226
    %v228 = vmul.f32 %v214, %v214
    %v229 = vmul.f32 %v219, %v219
    %230 = vadd.xlane.f32.xlu0 %v228
    %v231 = vpop.xlane.xlu0 %230
    %232 = vadd.xlane.f32.xlu0 %v229
    %v233 = vpop.xlane.xlu0 %232
    %v234 = vadd.f32 %v225, %v231
    %v235 = vadd.f32 %v227, %v233
    %v236 = vmul.f32 %v234, 0.00390625
    %v237 = vmul.f32 %v235, 0.00390625
    %v238 = vadd.f32 %v236, 1e-08
    %v239 = vadd.f32 %v237, 1e-08
    %v240 = vrsqrt.pop %v238
    %v241 = vrsqrt.pop %v239
    %v242 = vld [vmem:[#allocation8] sm:$0xff]
    %v243 = vld [vmem:[#allocation8 + $0x8] sm:$0xff]
    %v244 = vld [vmem:[#allocation8 + $0x10] sm:$0xff]
    %v245 = vld [vmem:[#allocation8 + $0x18] sm:$0xff]
    %v246 = vld [vmem:[#allocation8 + $0x20] sm:$0xff]
    %v247 = vld [vmem:[#allocation8 + $0x28] sm:$0xff]
    %v248 = vld [vmem:[#allocation8 + $0x30] sm:$0xff]
    %v249 = vld [vmem:[#allocation8 + $0x38] sm:$0xff]
    %v250 = vld [vmem:[#allocation8 + $0x40] sm:$0xff]
    %v251 = vld [vmem:[#allocation8 + $0x48] sm:$0xff]
    %v252 = vld [vmem:[#allocation8 + $0x50] sm:$0xff]
    %v253 = vld [vmem:[#allocation8 + $0x58] sm:$0xff]
    %v254 = vld [vmem:[#allocation8 + $0x60] sm:$0xff]
    %v255 = vld [vmem:[#allocation8 + $0x68] sm:$0xff]
    %v256 = vld [vmem:[#allocation8 + $0x70] sm:$0xff]
    %v257 = vld [vmem:[#allocation8 + $0x78] sm:$0xff]
    %v258 = vld [vmem:[#allocation8 + $0x80] sm:$0xff]
    %v259 = vld [vmem:[#allocation8 + $0x88] sm:$0xff]
    %v260 = vld [vmem:[#allocation8 + $0x90] sm:$0xff]
    %v261 = vld [vmem:[#allocation8 + $0x98] sm:$0xff]
    %v262 = vld [vmem:[#allocation8 + $0xa0] sm:$0xff]
    %v263 = vld [vmem:[#allocation8 + $0xa8] sm:$0xff]
    %v264 = vld [vmem:[#allocation8 + $0xb0] sm:$0xff]
    %v265 = vld [vmem:[#allocation8 + $0xb8] sm:$0xff]
    %v266 = vld [vmem:[#allocation8 + $0xc0] sm:$0xff]
    %v267 = vld [vmem:[#allocation8 + $0xc8] sm:$0xff]
    %v268 = vld [vmem:[#allocation8 + $0xd0] sm:$0xff]
    %v269 = vld [vmem:[#allocation8 + $0xd8] sm:$0xff]
    %v270 = vld [vmem:[#allocation8 + $0xe0] sm:$0xff]
    %v271 = vld [vmem:[#allocation8 + $0xe8] sm:$0xff]
    %v272 = vld [vmem:[#allocation8 + $0xf0] sm:$0xff]
    %v273 = vld [vmem:[#allocation8 + $0xf8] sm:$0xff]
    %274 = vmatprep.subr.mxu0 0.0
    %275 = vmatpush1.msra.mxu0 %v257
    %276 = vmatprep.subr.mxu0 0.0
    %277 = vmatpush1.msra.mxu0 %v256
    %278 = vmatprep.subr.mxu0 0.0
    %279 = vmatpush1.msra.mxu0 %v255
    %280 = vmatprep.subr.mxu0 0.0
    %281 = vmatpush1.msra.mxu0 %v254
    %282 = vmatprep.subr.mxu0 0.0
    %283 = vmatpush1.msra.mxu0 %v253
    %284 = vmatprep.subr.mxu0 0.0
    %285 = vmatpush1.msra.mxu0 %v252
    %286 = vmatprep.subr.mxu0 0.0
    %287 = vmatpush1.msra.mxu0 %v251
    %288 = vmatprep.subr.mxu0 0.0
    %289 = vmatpush1.msra.mxu0 %v250
    %290 = vmatprep.subr.mxu0 0.0
    %291 = vmatpush1.msra.mxu0 %v249
    %292 = vmatprep.subr.mxu0 0.0
    %293 = vmatpush1.msra.mxu0 %v248
    %294 = vmatprep.subr.mxu0 0.0
    %295 = vmatpush1.msra.mxu0 %v247
    %296 = vmatprep.subr.mxu0 0.0
    %297 = vmatpush1.msra.mxu0 %v246
    %298 = vmatprep.subr.mxu0 0.0
    %299 = vmatpush1.msra.mxu0 %v245
    %300 = vmatprep.subr.mxu0 0.0
    %301 = vmatpush1.msra.mxu0 %v244
    %302 = vmatprep.subr.mxu0 0.0
    %303 = vmatpush1.msra.mxu0 %v243
    %304 = vmatprep.subr.mxu0 0.0
    %305 = vmatpush1.msra.mxu0 %v242
    %306 = vmatprep.subr.mxu0 0.0
    %307 = vmatpush2.msra.mxu0 %v273
    %308 = vmatprep.subr.mxu0 0.0
    %309 = vmatpush2.msra.mxu0 %v272
    %310 = vmatprep.subr.mxu0 0.0
    %311 = vmatpush2.msra.mxu0 %v271
    %312 = vmatprep.subr.mxu0 0.0
    %313 = vmatpush2.msra.mxu0 %v270
    %314 = vmatprep.subr.mxu0 0.0
    %315 = vmatpush2.msra.mxu0 %v269
    %316 = vmatprep.subr.mxu0 0.0
    %317 = vmatpush2.msra.mxu0 %v268
    %318 = vmatprep.subr.mxu0 0.0
    %319 = vmatpush2.msra.mxu0 %v267
    %320 = vmatprep.subr.mxu0 0.0
    %321 = vmatpush2.msra.mxu0 %v266
    %322 = vmatprep.subr.mxu0 0.0
    %323 = vmatpush2.msra.mxu0 %v265
    %324 = vmatprep.subr.mxu0 0.0
    %325 = vmatpush2.msra.mxu0 %v264
    %326 = vmatprep.subr.mxu0 0.0
    %327 = vmatpush2.msra.mxu0 %v263
    %328 = vmatprep.subr.mxu0 0.0
    %329 = vmatpush2.msra.mxu0 %v262
    %330 = vmatprep.subr.mxu0 0.0
    %331 = vmatpush2.msra.mxu0 %v261
    %332 = vmatprep.subr.mxu0 0.0
    %333 = vmatpush2.msra.mxu0 %v260
    %334 = vmatprep.subr.mxu0 0.0
    %335 = vmatpush2.msra.mxu0 %v259
    %336 = vmatprep.subr.mxu0 0.0
    %337 = vmatpush2.msra.mxu0 %v258
    %338 = vmatprep.mubr.f32.mxu0 %v214
    %339 = vmatmul.mubr.f32.gmra.mxu0 %v134
    %v340 = vpop.f32.mrf.mxu0
    %v341 = vadd.f32 0.0, %v340
    %v342 = vpop.f32.mrf.mxu0
    %343 = vmatprep.mubr.f32.mxu0 %v219
    %344 = vmatmul.mubr.f32.gmra.mxu0 %v135
    %v345 = vpop.f32.mrf.mxu0
    %v346 = vadd.f32 0.0, %v345
    %v347 = vpop.f32.mrf.mxu0
    %348 = vdwg.mxu0
    %v349 = vmul.f32 %v341, %v240
    %v350 = vmul.f32 %v346, %v241
    %v351 = vld [vmem:[%s4] sm:$0x1]
    %v353 = vlaneseq
    %v354 = vshrl.u32 %v353, 7
    %v355 = vsub.s32 0, %v354
    %v356 = vrot.slane %v351, %v355
    %v358 = vadd.f32 %v349, %v356
    %v359 = vadd.f32 %v350, %v356
    %v360 = vmul.f32 %v358, 0.2
    %v361 = vmul.f32 %v359, 0.2
    %v362 = vmax.f32 %v358, %v360
    %v363 = vmax.f32 %v359, %v361
    %v364 = vld [vmem:[#allocation10] sm:$0xff]
    %v365 = vld [vmem:[#allocation10 + $0x8] sm:$0xff]
    %v366 = vld [vmem:[#allocation10 + $0x10] sm:$0xff]
    %v367 = vld [vmem:[#allocation10 + $0x18] sm:$0xff]
    %v368 = vld [vmem:[#allocation10 + $0x20] sm:$0xff]
    %v369 = vld [vmem:[#allocation10 + $0x28] sm:$0xff]
    %v370 = vld [vmem:[#allocation10 + $0x30] sm:$0xff]
    %v371 = vld [vmem:[#allocation10 + $0x38] sm:$0xff]
    %v372 = vld [vmem:[#allocation10 + $0x40] sm:$0xff]
    %v373 = vld [vmem:[#allocation10 + $0x48] sm:$0xff]
    %v374 = vld [vmem:[#allocation10 + $0x50] sm:$0xff]
    %v375 = vld [vmem:[#allocation10 + $0x58] sm:$0xff]
    %v376 = vld [vmem:[#allocation10 + $0x60] sm:$0xff]
    %v377 = vld [vmem:[#allocation10 + $0x68] sm:$0xff]
    %v378 = vld [vmem:[#allocation10 + $0x70] sm:$0xff]
    %v379 = vld [vmem:[#allocation10 + $0x78] sm:$0xff]
    %v380 = vld [vmem:[%s6] sm:$0x1]
    %v382 = vlaneseq
    %v383 = vshrl.u32 %v382, 7
    %v384 = vsub.s32 0, %v383
    %v385 = vrot.slane %v380, %v384
    %387 = vmatprep.subr.mxu0 0.0
    %388 = vmatpush1.msra.mxu0 %v379
    %389 = vmatprep.subr.mxu0 0.0
    %390 = vmatpush1.msra.mxu0 %v378
    %391 = vmatprep.subr.mxu0 0.0
    %392 = vmatpush1.msra.mxu0 %v377
    %393 = vmatprep.subr.mxu0 0.0
    %394 = vmatpush1.msra.mxu0 %v376
    %395 = vmatprep.subr.mxu0 0.0
    %396 = vmatpush1.msra.mxu0 %v375
    %397 = vmatprep.subr.mxu0 0.0
    %398 = vmatpush1.msra.mxu0 %v374
    %399 = vmatprep.subr.mxu0 0.0
    %400 = vmatpush1.msra.mxu0 %v373
    %401 = vmatprep.subr.mxu0 0.0
    %402 = vmatpush1.msra.mxu0 %v372
    %403 = vmatprep.subr.mxu0 0.0
    %404 = vmatpush1.msra.mxu0 %v371
    %405 = vmatprep.subr.mxu0 0.0
    %406 = vmatpush1.msra.mxu0 %v370
    %407 = vmatprep.subr.mxu0 0.0
    %408 = vmatpush1.msra.mxu0 %v369
    %409 = vmatprep.subr.mxu0 0.0
    %410 = vmatpush1.msra.mxu0 %v368
    %411 = vmatprep.subr.mxu0 0.0
    %412 = vmatpush1.msra.mxu0 %v367
    %413 = vmatprep.subr.mxu0 0.0
    %414 = vmatpush1.msra.mxu0 %v366
    %415 = vmatprep.subr.mxu0 0.0
    %416 = vmatpush1.msra.mxu0 %v365
    %417 = vmatprep.subr.mxu0 0.0
    %418 = vmatpush1.msra.mxu0 %v364
    %419 = vmatprep.subr.mxu0 0.0
    %420 = vmatpush2.msra.mxu0 0.0
    %421 = vmatprep.subr.mxu0 0.0
    %422 = vmatpush2.msra.mxu0 0.0
    %423 = vmatprep.subr.mxu0 0.0
    %424 = vmatpush2.msra.mxu0 0.0
    %425 = vmatprep.subr.mxu0 0.0
    %426 = vmatpush2.msra.mxu0 0.0
    %427 = vmatprep.subr.mxu0 0.0
    %428 = vmatpush2.msra.mxu0 0.0
    %429 = vmatprep.subr.mxu0 0.0
    %430 = vmatpush2.msra.mxu0 0.0
    %431 = vmatprep.subr.mxu0 0.0
    %432 = vmatpush2.msra.mxu0 0.0
    %433 = vmatprep.subr.mxu0 0.0
    %434 = vmatpush2.msra.mxu0 0.0
    %435 = vmatprep.subr.mxu0 0.0
    %436 = vmatpush2.msra.mxu0 0.0
    %437 = vmatprep.subr.mxu0 0.0
    %438 = vmatpush2.msra.mxu0 0.0
    %439 = vmatprep.subr.mxu0 0.0
    %440 = vmatpush2.msra.mxu0 0.0
    %441 = vmatprep.subr.mxu0 0.0
    %442 = vmatpush2.msra.mxu0 0.0
    %443 = vmatprep.subr.mxu0 0.0
    %444 = vmatpush2.msra.mxu0 0.0
    %445 = vmatprep.subr.mxu0 0.0
    %446 = vmatpush2.msra.mxu0 0.0
    %447 = vmatprep.subr.mxu0 0.0
    %448 = vmatpush2.msra.mxu0 0.0
    %449 = vmatprep.subr.mxu0 0.0
    %450 = vmatpush2.msra.mxu0 0.0
    %451 = vmatprep.mubr.f32.mxu0 0.0
    %452 = vmatmul.mubr.f32.gmra.mxu0 %v362
    %v453 = vpop.f32.mrf.mxu0
    %v454 = vadd.f32 %v385, %v453
    %v455 = vpop.f32.mrf.mxu0
    %456 = vmatprep.mubr.f32.mxu0 0.0
    %457 = vmatmul.mubr.f32.gmra.mxu0 %v363
    %v458 = vpop.f32.mrf.mxu0
    %v459 = vadd.f32 %v385, %v458
    %v460 = vpop.f32.mrf.mxu0
    %461 = vdwg.mxu0
    %v462 = vmul.f32 %v454, 0.2
    %v463 = vmul.f32 %v459, 0.2
    %v464 = vmax.f32 %v454, %v462
    %v465 = vmax.f32 %v459, %v463
    %v466 = vld [vmem:[#allocation11] sm:$0xff]
    %v467 = vld [vmem:[#allocation11 + $0x8] sm:$0xff]
    %v468 = vld [vmem:[#allocation11 + $0x10] sm:$0xff]
    %v469 = vld [vmem:[#allocation11 + $0x18] sm:$0xff]
    %v470 = vld [vmem:[#allocation11 + $0x20] sm:$0xff]
    %v471 = vld [vmem:[#allocation11 + $0x28] sm:$0xff]
    %v472 = vld [vmem:[#allocation11 + $0x30] sm:$0xff]
    %v473 = vld [vmem:[#allocation11 + $0x38] sm:$0xff]
    %v474 = vld [vmem:[#allocation11 + $0x40] sm:$0xff]
    %v475 = vld [vmem:[#allocation11 + $0x48] sm:$0xff]
    %v476 = vld [vmem:[#allocation11 + $0x50] sm:$0xff]
    %v477 = vld [vmem:[#allocation11 + $0x58] sm:$0xff]
    %v478 = vld [vmem:[#allocation11 + $0x60] sm:$0xff]
    %v479 = vld [vmem:[#allocation11 + $0x68] sm:$0xff]
    %v480 = vld [vmem:[#allocation11 + $0x70] sm:$0xff]
    %v481 = vld [vmem:[#allocation11 + $0x78] sm:$0xff]
    %v482 = vld [vmem:[%s8] sm:$0x1]
    %v484 = vlaneseq
    %v485 = vshrl.u32 %v484, 7
    %v486 = vsub.s32 0, %v485
    %v487 = vrot.slane %v482, %v486
    %489 = vmatprep.subr.mxu0 0.0
    %490 = vmatpush1.msra.mxu0 %v481
    %491 = vmatprep.subr.mxu0 0.0
    %492 = vmatpush1.msra.mxu0 %v480
    %493 = vmatprep.subr.mxu0 0.0
    %494 = vmatpush1.msra.mxu0 %v479
    %495 = vmatprep.subr.mxu0 0.0
    %496 = vmatpush1.msra.mxu0 %v478
    %497 = vmatprep.subr.mxu0 0.0
    %498 = vmatpush1.msra.mxu0 %v477
    %499 = vmatprep.subr.mxu0 0.0
    %500 = vmatpush1.msra.mxu0 %v476
    %501 = vmatprep.subr.mxu0 0.0
    %502 = vmatpush1.msra.mxu0 %v475
    %503 = vmatprep.subr.mxu0 0.0
    %504 = vmatpush1.msra.mxu0 %v474
    %505 = vmatprep.subr.mxu0 0.0
    %506 = vmatpush1.msra.mxu0 %v473
    %507 = vmatprep.subr.mxu0 0.0
    %508 = vmatpush1.msra.mxu0 %v472
    %509 = vmatprep.subr.mxu0 0.0
    %510 = vmatpush1.msra.mxu0 %v471
    %511 = vmatprep.subr.mxu0 0.0
    %512 = vmatpush1.msra.mxu0 %v470
    %513 = vmatprep.subr.mxu0 0.0
    %514 = vmatpush1.msra.mxu0 %v469
    %515 = vmatprep.subr.mxu0 0.0
    %516 = vmatpush1.msra.mxu0 %v468
    %517 = vmatprep.subr.mxu0 0.0
    %518 = vmatpush1.msra.mxu0 %v467
    %519 = vmatprep.subr.mxu0 0.0
    %520 = vmatpush1.msra.mxu0 %v466
    %521 = vmatprep.subr.mxu0 0.0
    %522 = vmatpush2.msra.mxu0 0.0
    %523 = vmatprep.subr.mxu0 0.0
    %524 = vmatpush2.msra.mxu0 0.0
    %525 = vmatprep.subr.mxu0 0.0
    %526 = vmatpush2.msra.mxu0 0.0
    %527 = vmatprep.subr.mxu0 0.0
    %528 = vmatpush2.msra.mxu0 0.0
    %529 = vmatprep.subr.mxu0 0.0
    %530 = vmatpush2.msra.mxu0 0.0
    %531 = vmatprep.subr.mxu0 0.0
    %532 = vmatpush2.msra.mxu0 0.0
    %533 = vmatprep.subr.mxu0 0.0
    %534 = vmatpush2.msra.mxu0 0.0
    %535 = vmatprep.subr.mxu0 0.0
    %536 = vmatpush2.msra.mxu0 0.0
    %537 = vmatprep.subr.mxu0 0.0
    %538 = vmatpush2.msra.mxu0 0.0
    %539 = vmatprep.subr.mxu0 0.0
    %540 = vmatpush2.msra.mxu0 0.0
    %541 = vmatprep.subr.mxu0 0.0
    %542 = vmatpush2.msra.mxu0 0.0
    %543 = vmatprep.subr.mxu0 0.0
    %544 = vmatpush2.msra.mxu0 0.0
    %545 = vmatprep.subr.mxu0 0.0
    %546 = vmatpush2.msra.mxu0 0.0
    %547 = vmatprep.subr.mxu0 0.0
    %548 = vmatpush2.msra.mxu0 0.0
    %549 = vmatprep.subr.mxu0 0.0
    %550 = vmatpush2.msra.mxu0 0.0
    %551 = vmatprep.subr.mxu0 0.0
    %552 = vmatpush2.msra.mxu0 0.0
    %553 = vmatprep.mubr.f32.mxu0 0.0
    %554 = vmatmul.mubr.f32.gmra.mxu0 %v464
    %v555 = vpop.f32.mrf.mxu0
    %v556 = vadd.f32 %v487, %v555
    %v557 = vpop.f32.mrf.mxu0
    %558 = vmatprep.mubr.f32.mxu0 0.0
    %559 = vmatmul.mubr.f32.gmra.mxu0 %v465
    %v560 = vpop.f32.mrf.mxu0
    %v561 = vadd.f32 %v487, %v560
    %v562 = vpop.f32.mrf.mxu0
    %563 = vdwg.mxu0
    %v564 = vmul.f32 %v556, 0.2
    %v565 = vmul.f32 %v561, 0.2
    %v566 = vmax.f32 %v556, %v564
    %v567 = vmax.f32 %v561, %v565
    %v568 = vld [vmem:[#allocation13] sm:$0xff]
    %v569 = vld [vmem:[#allocation13 + $0x8] sm:$0xff]
    %v570 = vld [vmem:[#allocation13 + $0x10] sm:$0xff]
    %v571 = vld [vmem:[#allocation13 + $0x18] sm:$0xff]
    %v572 = vld [vmem:[#allocation13 + $0x20] sm:$0xff]
    %v573 = vld [vmem:[#allocation13 + $0x28] sm:$0xff]
    %v574 = vld [vmem:[#allocation13 + $0x30] sm:$0xff]
    %v575 = vld [vmem:[#allocation13 + $0x38] sm:$0xff]
    %v576 = vld [vmem:[#allocation13 + $0x40] sm:$0xff]
    %v577 = vld [vmem:[#allocation13 + $0x48] sm:$0xff]
    %v578 = vld [vmem:[#allocation13 + $0x50] sm:$0xff]
    %v579 = vld [vmem:[#allocation13 + $0x58] sm:$0xff]
    %v580 = vld [vmem:[#allocation13 + $0x60] sm:$0xff]
    %v581 = vld [vmem:[#allocation13 + $0x68] sm:$0xff]
    %v582 = vld [vmem:[#allocation13 + $0x70] sm:$0xff]
    %v583 = vld [vmem:[#allocation13 + $0x78] sm:$0xff]
    %v584 = vld [vmem:[%s10] sm:$0x1]
    %v586 = vlaneseq
    %v587 = vshrl.u32 %v586, 7
    %v588 = vsub.s32 0, %v587
    %v589 = vrot.slane %v584, %v588
    %591 = vmatprep.subr.mxu0 0.0
    %592 = vmatpush1.msra.mxu0 %v583
    %593 = vmatprep.subr.mxu0 0.0
    %594 = vmatpush1.msra.mxu0 %v582
    %595 = vmatprep.subr.mxu0 0.0
    %596 = vmatpush1.msra.mxu0 %v581
    %597 = vmatprep.subr.mxu0 0.0
    %598 = vmatpush1.msra.mxu0 %v580
    %599 = vmatprep.subr.mxu0 0.0
    %600 = vmatpush1.msra.mxu0 %v579
    %601 = vmatprep.subr.mxu0 0.0
    %602 = vmatpush1.msra.mxu0 %v578
    %603 = vmatprep.subr.mxu0 0.0
    %604 = vmatpush1.msra.mxu0 %v577
    %605 = vmatprep.subr.mxu0 0.0
    %606 = vmatpush1.msra.mxu0 %v576
    %607 = vmatprep.subr.mxu0 0.0
    %608 = vmatpush1.msra.mxu0 %v575
    %609 = vmatprep.subr.mxu0 0.0
    %610 = vmatpush1.msra.mxu0 %v574
    %611 = vmatprep.subr.mxu0 0.0
    %612 = vmatpush1.msra.mxu0 %v573
    %613 = vmatprep.subr.mxu0 0.0
    %614 = vmatpush1.msra.mxu0 %v572
    %615 = vmatprep.subr.mxu0 0.0
    %616 = vmatpush1.msra.mxu0 %v571
    %617 = vmatprep.subr.mxu0 0.0
    %618 = vmatpush1.msra.mxu0 %v570
    %619 = vmatprep.subr.mxu0 0.0
    %620 = vmatpush1.msra.mxu0 %v569
    %621 = vmatprep.subr.mxu0 0.0
    %622 = vmatpush1.msra.mxu0 %v568
    %623 = vmatprep.subr.mxu0 0.0
    %624 = vmatpush2.msra.mxu0 0.0
    %625 = vmatprep.subr.mxu0 0.0
    %626 = vmatpush2.msra.mxu0 0.0
    %627 = vmatprep.subr.mxu0 0.0
    %628 = vmatpush2.msra.mxu0 0.0
    %629 = vmatprep.subr.mxu0 0.0
    %630 = vmatpush2.msra.mxu0 0.0
    %631 = vmatprep.subr.mxu0 0.0
    %632 = vmatpush2.msra.mxu0 0.0
    %633 = vmatprep.subr.mxu0 0.0
    %634 = vmatpush2.msra.mxu0 0.0
    %635 = vmatprep.subr.mxu0 0.0
    %636 = vmatpush2.msra.mxu0 0.0
    %637 = vmatprep.subr.mxu0 0.0
    %638 = vmatpush2.msra.mxu0 0.0
    %639 = vmatprep.subr.mxu0 0.0
    %640 = vmatpush2.msra.mxu0 0.0
    %641 = vmatprep.subr.mxu0 0.0
    %642 = vmatpush2.msra.mxu0 0.0
    %643 = vmatprep.subr.mxu0 0.0
    %644 = vmatpush2.msra.mxu0 0.0
    %645 = vmatprep.subr.mxu0 0.0
    %646 = vmatpush2.msra.mxu0 0.0
    %647 = vmatprep.subr.mxu0 0.0
    %648 = vmatpush2.msra.mxu0 0.0
    %649 = vmatprep.subr.mxu0 0.0
    %650 = vmatpush2.msra.mxu0 0.0
    %651 = vmatprep.subr.mxu0 0.0
    %652 = vmatpush2.msra.mxu0 0.0
    %653 = vmatprep.subr.mxu0 0.0
    %654 = vmatpush2.msra.mxu0 0.0
    %655 = vmatprep.mubr.f32.mxu0 0.0
    %656 = vmatmul.mubr.f32.gmra.mxu0 %v566
    %v657 = vpop.f32.mrf.mxu0
    %v658 = vadd.f32 %v589, %v657
    %v659 = vpop.f32.mrf.mxu0
    %660 = vmatprep.mubr.f32.mxu0 0.0
    %661 = vmatmul.mubr.f32.gmra.mxu0 %v567
    %v662 = vpop.f32.mrf.mxu0
    %v663 = vadd.f32 %v589, %v662
    %v664 = vpop.f32.mrf.mxu0
    %665 = vdwg.mxu0
    %v666 = vmul.f32 %v658, 0.2
    %v667 = vmul.f32 %v663, 0.2
    %v668 = vmax.f32 %v658, %v666
    %v669 = vmax.f32 %v663, %v667
    %670 = vst [vmem:[#allocation14] sm:$0xff] %v668
    %671 = vst [vmem:[#allocation14 + $0x8] sm:$0xff] %v669
    // Predicated region
    $region74: #{tpu_custom_call.1} parent=1 // pred_check
      _
    $region75: #{tpu_custom_call.1} parent=1 // pred_check_branch
      %673 = sbr.rel (0) target = $region77
    $region76: #{tpu_custom_call.1} parent=1 // pred_region
      %s675 = ssub.s32 256, 256
      %676 = vsyncadd [#allocation4], %s675
      %s677 = sshll.u32 [#allocation14], 4
      %s678 = int_to_ptr.vmem [resolvable:$true] %s677
      %683 = dma.vmem_to_hbm [thread:$0]  %s678, 256, %s11, [#allocation4], 128, 128, 8
    $region77: #{tpu_custom_call.1} parent=1 // pred_fallthru
      _
    // Predicated region
    $region78: #{tpu_custom_call.1} parent=1 // pred_check
      _
    $region79: #{tpu_custom_call.1} parent=1 // pred_check_branch
      %685 = sbr.rel (0) target = $region81
    $region80: #{tpu_custom_call.1} parent=1 // pred_region
      %686 = dma.done [#allocation4], 256
    $region81: #{tpu_custom_call.1} parent=1 // pred_fallthru
      _
    %687 = vsyncpa [#allocation3], 1
    %688 = vsyncpa [#allocation6], 1
    %689 = vsyncpa [#allocation9], 1
    %690 = vsyncpa [#allocation12], 1
    %691 = vsyncpa [#allocation4], 1

</llo_original>
